<compile_context>
chip_gen: v6e
topology: v6e:2x2x1
jax: 0.10.0
libtpu: 0.0.40
codegen_flags: <defaults>
</compile_context>

<pallas_src>
import functools

import jax
import jax.numpy as jnp
from jax.experimental import pallas as pl
from jax.experimental.pallas import tpu as pltpu


def _get_int_attr(obj, names):
    for name in names:
        v = getattr(obj, name, None)
        if v is None:
            continue
        try:
            v = int(v)
        except (TypeError, ValueError):
            continue
        if v > 0:
            return v
    return None


@functools.lru_cache(maxsize=1)
def _chip_info():
    """Best-effort (vmem_capacity_bytes, num_tensorcores, is_v5e) query."""
    kind = ""
    try:
        kind = jax.devices()[0].device_kind.lower()
    except Exception:
        kind = ""
    vmem_bytes = None
    num_tc = None
    try:
        info = pltpu.get_tpu_info()
        vmem_bytes = _get_int_attr(
            info, ("vmem_capacity_bytes", "vmem_bytes", "vmem_size_bytes"))
        num_tc = _get_int_attr(
            info, ("num_tensorcores", "tensorcore_count", "num_cores",
                   "cores_per_chip", "num_cores_per_chip"))
    except Exception:
        pass
    if vmem_bytes is None:
        vmem_bytes = (64 << 20) if "v7" in kind else (128 << 20)
    if num_tc is None:
        num_tc = 2 if "v7" in kind else 1
    is_v5e = ("v5 lite" in kind) or ("v5e" in kind) or ("v5litepod" in kind)
    return int(vmem_bytes), max(1, int(num_tc)), bool(is_v5e)


def _channel_norm_kernel(x_ref, o_ref, *, eps: float, num_channels: int,
                         fp32_epilogue: bool):
    """Normalize over the channel axis (axis -2 of the (bt, C, H*W) block)."""
    inv_c = jnp.float32(1.0 / num_channels)
    inv_cm1 = jnp.float32(1.0 / (num_channels - 1))   # unbiased (torch default)
    epsf = jnp.float32(eps)
    if fp32_epilogue:
        # Exact two-pass variance, all in f32 (input is f32, or chip lacks
        # bf16 VALU).  Matches the PyTorch reference formulation.
        x = x_ref[...].astype(jnp.float32)
        mean = jnp.sum(x, axis=-2, keepdims=True) * inv_c
        c = x - mean
        var = jnp.sum(c * c, axis=-2, keepdims=True) * inv_cm1
        o_ref[...] = (c * jax.lax.rsqrt(var + epsf)).astype(o_ref.dtype)
    else:
        # Narrow dtypes (bf16, ...): accumulate statistics in f32 but keep the
        # elementwise epilogue in the native dtype so no full-block f32 copy
        # has to stay live in VMEM alongside the enlarged blocks.
        x = x_ref[...]
        xf = x.astype(jnp.float32)
        s1 = jnp.sum(xf, axis=-2, keepdims=True)
        s2 = jnp.sum(xf * xf, axis=-2, keepdims=True)
        mean = s1 * inv_c
        var = jnp.maximum(s2 - s1 * mean, 0.0) * inv_cm1
        inv_std = jax.lax.rsqrt(var + epsf)
        o_ref[...] = ((x - mean.astype(x.dtype))
                      * inv_std.astype(x.dtype)).astype(o_ref.dtype)


def channel_norm_2d(x: jax.Array, eps: float = 1e-5, *,
                    target_block_bytes: int | None = None) -> jax.Array:
    """ChannelNorm2D forward. x is NCHW (PyTorch layout)."""
    N, C, H, W = x.shape
    if C < 2:
        raise ValueError("ChannelNorm2D needs C >= 2 (unbiased var divides by C-1).")
    hw = H * W
    itemsize = x.dtype.itemsize

    vmem_bytes, num_tc, is_v5e = _chip_info()
    # v5e has no bf16 VPU -> keep math in f32 there; f32 inputs always use the
    # exact two-pass variant.
    fp32_epilogue = (itemsize >= 4) or is_v5e

    # ---- Generation-aware block sizing --------------------------------------
    # Live VMEM per grid step (double buffering by default):
    #   2 x input block + 2 x output block + in-kernel f32 temporaries.
    f32_blowup = 4.0 / itemsize
    temp_blocks = 2.0 * f32_blowup if fp32_epilogue else 1.0
    live_factor = 4.0 + temp_blocks               # in units of block_bytes
    budget = 0.6 * vmem_bytes                     # headroom below physical VMEM
    # ~6-8 MiB blocks on 64 MiB-VMEM parts (v7x), ~12-16 MiB on 128 MiB parts.
    cap = (16 << 20) if vmem_bytes >= (96 << 20) else (8 << 20)
    if target_block_bytes is None:
        target_block_bytes = max(1 << 20, min(cap, int(budget / live_factor)))

    per_row_bytes = C * hw * itemsize             # one batch element
    bt = max(1, int(target_block_bytes // per_row_bytes))
    bt = int(min(bt, N))

    if num_tc >= 2 and N >= 2:
        # Megacore: make sure both TensorCores get work, and (best effort) an
        # even number of steps so neither core idles ~33% of the time.
        bt = min(bt, -(-N // 2))
        steps = -(-N // bt)
        if steps % 2 != 0 and steps < N:
            bt = max(1, -(-N // (steps + 1)))
    steps = int(-(-N // bt))

    block_bytes = bt * per_row_bytes
    vmem_limit = int(live_factor * block_bytes) + (4 << 20)
    vmem_limit = max(32 << 20, min(vmem_limit, int(0.9 * vmem_bytes)))

    kernel = functools.partial(_channel_norm_kernel, eps=float(eps),
                               num_channels=C, fp32_epilogue=fp32_epilogue)
    cost = pl.CostEstimate(
        flops=7 * N * C * hw,
        transcendentals=N * hw,
        bytes_accessed=2 * N * C * hw * itemsize,
    )
    cparams = pltpu.CompilerParams(
        dimension_semantics=("parallel",),
        vmem_limit_bytes=vmem_limit,
    )

    # Free (contiguous) reshape: (N, C, H*W) keeps channels on sublanes and
    # spatial on lanes.  Last two block dims are the full array dims, so the
    # (8, 128) tiling constraint is always satisfied.  For the 8x8 stage
    # (hw = 64 < 128) stores are masked, which is cheaper than the two
    # wrapper-side HBM transposes the previous version used.
    x3 = x.reshape(N, C, hw)
    out3 = pl.pallas_call(
        kernel,
        out_shape=jax.ShapeDtypeStruct((N, C, hw), x.dtype),
        grid_spec=pl.GridSpec(
            grid=(steps,),
            in_specs=[pl.BlockSpec((bt, C, hw), lambda n: (n, 0, 0))],
            out_specs=pl.BlockSpec((bt, C, hw), lambda n: (n, 0, 0)),
        ),
        compiler_params=cparams,
        cost_estimate=cost,
    )(x3)
    return out3.reshape(N, C, H, W)


def _reference_channel_norm(x: jax.Array, eps: float = 1e-5) -> jax.Array:
    # Pure-JAX reference mirroring the PyTorch semantics (unbiased variance).
    xf = x.astype(jnp.float32)
    mean = jnp.mean(xf, axis=1, keepdims=True)
    c = xf - mean
    var = jnp.sum(c * c, axis=1, keepdims=True) / (x.shape[1] - 1)
    return (c / jnp.sqrt(var + eps)).astype(x.dtype)


if __name__ == "__main__":
    key = jax.random.PRNGKey(0)
    k1, k2, k3 = jax.random.split(key, 3)

    # Lane-dense stage: 16x16 spatial (H*W = 256), like the early CIFAR stages.
    x = jax.random.normal(k1, (2, 4, 16, 16), dtype=jnp.float32)
    out = jax.block_until_ready(channel_norm_2d(x, eps=1e-5))
    ref = _reference_channel_norm(x, eps=1e-5)
    assert out.shape == x.shape
    assert jnp.allclose(out, ref, atol=1e-5, rtol=1e-5), "16x16 f32 mismatch vs reference"

    # Non-lane-dense stage: 8x8 spatial (H*W = 64 < 128 lanes) -> masked stores,
    # no wrapper-side transposes anymore.
    x_s = jax.random.normal(k2, (4, 16, 8, 8), dtype=jnp.float32)
    out_s = jax.block_until_ready(channel_norm_2d(x_s, eps=1e-5))
    ref_s = _reference_channel_norm(x_s, eps=1e-5)
    assert out_s.shape == x_s.shape
    assert jnp.allclose(out_s, ref_s, atol=1e-5, rtol=1e-5), "8x8 f32 mismatch vs reference"

    # Narrow-dtype path: statistics in f32, native-dtype epilogue on bf16-VALU
    # chips (f32 fallback on v5e).
    x_b = jax.random.normal(k3, (2, 16, 8, 8), dtype=jnp.bfloat16)
    out_b = jax.block_until_ready(channel_norm_2d(x_b, eps=1e-5))
    ref_b = _reference_channel_norm(x_b, eps=1e-5)
    assert out_b.shape == x_b.shape
    assert jnp.allclose(out_b.astype(jnp.float32), ref_b.astype(jnp.float32),
                        atol=5e-2, rtol=5e-2), "bf16 mismatch vs reference"

    print("KERNEL_OK")
</pallas_src>

<mosaic_0001>
module attributes {stable_mosaic.version = 11 : i64} {
  func.func @_channel_norm_kernel(%arg0: i32, %arg1: memref<2x4x256xf32, #tpu.memory_space<vmem>>, %arg2: memref<2x4x256xf32, #tpu.memory_space<vmem>>) attributes {dimension_semantics = [#tpu.dimension_semantics<parallel>], iteration_bounds = array<i64: 1>, scalar_prefetch = 0 : i64, scratch_operands = 0 : i64, tpu.core_type = #tpu.core_type<tc>, window_params = [{transform_indices = @transform_0, window_bounds = array<i64: 2, 4, 256>}, {transform_indices = @transform_1, window_bounds = array<i64: 2, 4, 256>}]} {
    %c0 = arith.constant 0 : index
    %c0_0 = arith.constant 0 : index
    %c0_1 = arith.constant 0 : index
    %0 = vector.load %arg1[%c0, %c0_0, %c0_1] : memref<2x4x256xf32, #tpu.memory_space<vmem>>, vector<2x4x256xf32>
    %cst = arith.constant dense<0.000000e+00> : vector<2x256xf32>
    %1 = vector.multi_reduction <add>, %0, %cst [1] : vector<2x4x256xf32> to vector<2x256xf32>
    %2 = vector.shape_cast %1 : vector<2x256xf32> to vector<2x1x256xf32>
    %cst_2 = arith.constant 2.500000e-01 : f32
    %3 = vector.broadcast %cst_2 : f32 to vector<2x1x256xf32>
    %4 = arith.mulf %2, %3 : vector<2x1x256xf32>
    %5 = vector.broadcast %4 : vector<2x1x256xf32> to vector<2x4x256xf32>
    %6 = arith.subf %0, %5 : vector<2x4x256xf32>
    %7 = arith.mulf %6, %6 : vector<2x4x256xf32>
    %cst_3 = arith.constant dense<0.000000e+00> : vector<2x256xf32>
    %8 = vector.multi_reduction <add>, %7, %cst_3 [1] : vector<2x4x256xf32> to vector<2x256xf32>
    %9 = vector.shape_cast %8 : vector<2x256xf32> to vector<2x1x256xf32>
    %cst_4 = arith.constant 0.333333343 : f32
    %10 = vector.broadcast %cst_4 : f32 to vector<2x1x256xf32>
    %11 = arith.mulf %9, %10 : vector<2x1x256xf32>
    %cst_5 = arith.constant 9.99999974E-6 : f32
    %12 = vector.broadcast %cst_5 : f32 to vector<2x1x256xf32>
    %13 = arith.addf %11, %12 : vector<2x1x256xf32>
    %14 = math.rsqrt %13 : vector<2x1x256xf32>
    %15 = vector.broadcast %14 : vector<2x1x256xf32> to vector<2x4x256xf32>
    %16 = arith.mulf %6, %15 : vector<2x4x256xf32>
    %c0_6 = arith.constant 0 : index
    %c0_7 = arith.constant 0 : index
    %c0_8 = arith.constant 0 : index
    %17 = vector.load %arg2[%c0_6, %c0_7, %c0_8] : memref<2x4x256xf32, #tpu.memory_space<vmem>>, vector<2x4x256xf32>
    tpu.vector_store %arg2[%c0_6, %c0_7, %c0_8], %16 {strides = array<i32>} : memref<2x4x256xf32, #tpu.memory_space<vmem>>, vector<2x4x256xf32>,
    return
  }
  func.func @transform_0(%arg0: i32) -> (i32, i32, i32) {
    %c0_i32 = arith.constant 0 : i32
    %c0_i32_0 = arith.constant 0 : i32
    %c0_i32_1 = arith.constant 0 : i32
    return %arg0, %c0_i32, %c0_i32_0 : i32, i32, i32
  }
  func.func @transform_1(%arg0: i32) -> (i32, i32, i32) {
    %c0_i32 = arith.constant 0 : i32
    %c0_i32_0 = arith.constant 0 : i32
    %c0_i32_1 = arith.constant 0 : i32
    return %arg0, %c0_i32, %c0_i32_0 : i32, i32, i32
  }
}

</mosaic_0001>

<llo_original>
// kernel: tpu_custom_call.1
$region0: #{tpu_custom_call.1}
  #allocation0 [shape = 'u32[]', space=smem, size = 0x4, offset = 0x4, fixed_abs, tag = 'smem constant byte address 0x4 - core index']
  #allocation1 [shape = 'u32[144,128]{1,0:T(1,128)}', space=vmem, size = 0x12000, scoped, tag = 'internal scratch']
  %s0 = inlined_call_operand.hbm [shape: f32[2,4,256], index: 0, kind: input, shape index: {}]
  %s1 = inlined_call_operand.hbm [shape: f32[2,4,256], index: 1, kind: output, shape index: {}]
  %s2 = sld [smem:[#allocation0]]
  $region18: #{tpu_custom_call.1} parent=0
    _
  %s4 = ssub.s32 1, %s2
  %s5 = scalar_select 0, %s4, %s2
  $region1: #{tpu_custom_call.1} parent=0
    #allocation2 [shape = 'u8[8192]{0}', space=vmem, size = 0x2000, scoped, tag = 'input window, operand 0, single buffered']
    #allocation3 [shape = 's32[1]{0}', space=sflag, size = 0x4, scoped, tag = 'scoped memory for tpu_custom_call.1']
    #allocation4 [shape = 's32[1]{0}', space=sflag, size = 0x4, scoped, tag = 'scoped memory for tpu_custom_call.1']
    #allocation5 [shape = 'u8[8192]{0}', space=vmem, size = 0x2000, scoped, tag = 'output window, operand 0, single buffered']
    %6 = vsyncpa [#allocation3], 0
    %7 = vsyncpa [#allocation4], 0
    // Predicated region
    $region2: #{tpu_custom_call.1} parent=1 // pred_check
      _
    $region3: #{tpu_custom_call.1} parent=1 // pred_check_branch
      %9 = sbr.rel (0) target = $region5
    $region4: #{tpu_custom_call.1} parent=1 // pred_region
      %s11 = ssub.s32 256, 256
      %12 = vsyncadd [#allocation3], %s11
      %s13 = sshll.u32 [#allocation2], 4
      %s14 = int_to_ptr.vmem [resolvable:$true] %s13
      %19 = dma.hbm_to_vmem [thread:$0]  %s0, 256, %s14, [#allocation3], 128, 128, 8
    $region5: #{tpu_custom_call.1} parent=1 // pred_fallthru
      _
    // Predicated region
    $region6: #{tpu_custom_call.1} parent=1 // pred_check
      _
    $region7: #{tpu_custom_call.1} parent=1 // pred_check_branch
      %21 = sbr.rel (0) target = $region9
    $region8: #{tpu_custom_call.1} parent=1 // pred_region
      %22 = dma.done [#allocation3], 256
    $region9: #{tpu_custom_call.1} parent=1 // pred_fallthru
      _
    %v23 = vld [vmem:[#allocation2] sm:$0xff]
    %v24 = vld [vmem:[#allocation2 + $0x8] sm:$0xff]
    %v27 = vcombine.high %v23, %v23
    %v28 = vcombine.high %v24, %v24
    %vm31 = vcmask 1043456
    %v32 = vsel %vm31, %v23, 0.0
    %v33 = vrot.slane %v32, 4
    %v34 = vadd.f32 %v32, %v33
    %v35 = vrot.slane %v34, 2
    %v36 = vadd.f32 %v34, %v35
    %v37 = vrot.slane %v36, 1
    %v38 = vadd.f32 %v36, %v37
    %v39 = vsel %vm31, %v27, 0.0
    %v40 = vrot.slane %v39, 4
    %v41 = vadd.f32 %v39, %v40
    %v42 = vrot.slane %v41, 2
    %v43 = vadd.f32 %v41, %v42
    %v44 = vrot.slane %v43, 1
    %v45 = vadd.f32 %v43, %v44
    %v46 = vsel %vm31, %v24, 0.0
    %v47 = vrot.slane %v46, 4
    %v48 = vadd.f32 %v46, %v47
    %v49 = vrot.slane %v48, 2
    %v50 = vadd.f32 %v48, %v49
    %v51 = vrot.slane %v50, 1
    %v52 = vadd.f32 %v50, %v51
    %v53 = vsel %vm31, %v28, 0.0
    %v54 = vrot.slane %v53, 4
    %v55 = vadd.f32 %v53, %v54
    %v56 = vrot.slane %v55, 2
    %v57 = vadd.f32 %v55, %v56
    %v58 = vrot.slane %v57, 1
    %v59 = vadd.f32 %v57, %v58
    %v60 = vmul.f32 %v38, 0.25
    %v61 = vmul.f32 %v45, 0.25
    %v62 = vmul.f32 %v52, 0.25
    %v63 = vmul.f32 %v59, 0.25
    %v68 = vcombine.low %v60, %v61
    %v69 = vcombine.low %v62, %v63
    %v72 = vsub.f32 %v23, %v68
    %v73 = vsub.f32 %v24, %v69
    %v74 = vmul.f32 %v72, %v72
    %v75 = vmul.f32 %v73, %v73
    %v78 = vcombine.high %v74, %v74
    %v79 = vcombine.high %v75, %v75
    %v82 = vsel %vm31, %v74, 0.0
    %v83 = vrot.slane %v82, 4
    %v84 = vadd.f32 %v82, %v83
    %v85 = vrot.slane %v84, 2
    %v86 = vadd.f32 %v84, %v85
    %v87 = vrot.slane %v86, 1
    %v88 = vadd.f32 %v86, %v87
    %v89 = vsel %vm31, %v78, 0.0
    %v90 = vrot.slane %v89, 4
    %v91 = vadd.f32 %v89, %v90
    %v92 = vrot.slane %v91, 2
    %v93 = vadd.f32 %v91, %v92
    %v94 = vrot.slane %v93, 1
    %v95 = vadd.f32 %v93, %v94
    %v96 = vsel %vm31, %v75, 0.0
    %v97 = vrot.slane %v96, 4
    %v98 = vadd.f32 %v96, %v97
    %v99 = vrot.slane %v98, 2
    %v100 = vadd.f32 %v98, %v99
    %v101 = vrot.slane %v100, 1
    %v102 = vadd.f32 %v100, %v101
    %v103 = vsel %vm31, %v79, 0.0
    %v104 = vrot.slane %v103, 4
    %v105 = vadd.f32 %v103, %v104
    %v106 = vrot.slane %v105, 2
    %v107 = vadd.f32 %v105, %v106
    %v108 = vrot.slane %v107, 1
    %v109 = vadd.f32 %v107, %v108
    %v110 = vmul.f32 %v88, 0.33333334
    %v111 = vmul.f32 %v95, 0.33333334
    %v112 = vmul.f32 %v102, 0.33333334
    %v113 = vmul.f32 %v109, 0.33333334
    %v114 = vadd.f32 %v110, 1e-05
    %v115 = vadd.f32 %v111, 1e-05
    %v116 = vadd.f32 %v112, 1e-05
    %v117 = vadd.f32 %v113, 1e-05
    %v118 = vrsqrt.pop %v114
    %v119 = vrsqrt.pop %v115
    %v120 = vrsqrt.pop %v116
    %v121 = vrsqrt.pop %v117
    %v126 = vcombine.low %v118, %v119
    %v127 = vcombine.low %v120, %v121
    %v130 = vmul.f32 %v72, %v126
    %v131 = vmul.f32 %v73, %v127
    %132 = vst [vmem:[#allocation5] sm:$0xff] %v130
    %133 = vst [vmem:[#allocation5 + $0x8] sm:$0xff] %v131
    // Predicated region
    $region10: #{tpu_custom_call.1} parent=1 // pred_check
      _
    $region11: #{tpu_custom_call.1} parent=1 // pred_check_branch
      %135 = sbr.rel (0) target = $region13
    $region12: #{tpu_custom_call.1} parent=1 // pred_region
      %s137 = ssub.s32 256, 256
      %138 = vsyncadd [#allocation4], %s137
      %s139 = sshll.u32 [#allocation5], 4
      %s140 = int_to_ptr.vmem [resolvable:$true] %s139
      %145 = dma.vmem_to_hbm [thread:$0]  %s140, 256, %s1, [#allocation4], 128, 128, 8
    $region13: #{tpu_custom_call.1} parent=1 // pred_fallthru
      _
    // Predicated region
    $region14: #{tpu_custom_call.1} parent=1 // pred_check
      _
    $region15: #{tpu_custom_call.1} parent=1 // pred_check_branch
      %147 = sbr.rel (0) target = $region17
    $region16: #{tpu_custom_call.1} parent=1 // pred_region
      %148 = dma.done [#allocation4], 256
    $region17: #{tpu_custom_call.1} parent=1 // pred_fallthru
      _
    %149 = vsyncpa [#allocation3], 1
    %150 = vsyncpa [#allocation4], 1

</llo_original>
